<compile_context>
chip_gen: v5e
topology: v5e:2x2
jax: 0.10.0
libtpu: 0.0.40
codegen_flags: <defaults>
</compile_context>

<pallas_src>
import functools

import jax
import jax.numpy as jnp
from jax import lax
from jax.experimental import pallas as pl
from jax.experimental.pallas import tpu as pltpu


def _round_up(x, m):
    return (x + m - 1) // m * m


def _attn_dropout_kernel(x1_ref, x2_ref, bits_ref, o_ref, *,
                         n_valid, keep_thr, keep_scale):
    # x1_ref: (1, Mp, Dp) bf16, x2_ref: (1, Np, Dp) bf16,
    # bits_ref: (1, Mp, Np) int32 (random bits in [0, 2^31)), o_ref: (1, Mp, Dp) f32
    x1 = x1_ref[0]
    x2 = x2_ref[0]

    # v1/v2: scaled scores on the MXU; contract the trailing feature dim directly
    # (no materialized x2.T).
    s = lax.dot_general(
        x1, x2,
        dimension_numbers=(((1,), (1,)), ((), ())),
        preferred_element_type=jnp.float32,
    ) * 0.125                                                   # (Mp, Np) f32

    # Mask padded key columns so they get zero softmax weight.
    col = lax.broadcasted_iota(jnp.int32, s.shape, 1)
    s = jnp.where(col < n_valid, s, -jnp.inf)

    # v3 (numerator only): normalization is deferred past the second matmul.
    m = jnp.max(s, axis=-1, keepdims=True)
    e = jnp.exp(s - m)                                          # (Mp, Np)
    denom = jnp.sum(e, axis=-1, keepdims=True)                  # (Mp, 1)

    # v4: dropout keep-mask via a single integer threshold compare.
    keep = bits_ref[0] >= jnp.int32(keep_thr)
    e_kept = jnp.where(keep, e, 0.0)

    # v5: second matmul in bf16 with f32 accumulation, then apply the deferred
    # softmax normalization and 1/(1-p) dropout scale as one (Mp,1) broadcast.
    out = jnp.dot(e_kept.astype(jnp.bfloat16), x2,
                  preferred_element_type=jnp.float32)           # (Mp, Dp)
    scale = pl.reciprocal(denom, approx=True) * jnp.float32(keep_scale)
    o_ref[0] = (out * scale).astype(o_ref.dtype)


def attn_dropout(x1, x2, key, *, drop_p=0.5, return_keep_mask=False):
    B, M, D = x1.shape
    B2, N, D2 = x2.shape
    assert B == B2 and D == D2

    # Pad to TPU-friendly shapes: sublane-aligned M, lane-aligned N and D
    # (lane-dense output is the biggest writeback lever; zero-padded D does not
    # change the contraction, padded N columns are masked in-kernel).
    Mp = _round_up(M, 8)
    Np = _round_up(N, 128)
    Dp = _round_up(D, 128)

    x1_p = jnp.zeros((B, Mp, Dp), jnp.bfloat16).at[:, :M, :D].set(
        x1.astype(jnp.bfloat16))
    x2_p = jnp.zeros((B, Np, Dp), jnp.bfloat16).at[:, :N, :D].set(
        x2.astype(jnp.bfloat16))

    # Dropout randomness generated outside the kernel (pltpu.prng_* has no
    # interpret/CPU lowering); top 31 bits -> signed int32 so the in-kernel
    # compare is a plain signed compare with a compile-time threshold.
    bits = jax.random.bits(key, (B, Mp, Np), dtype=jnp.uint32)
    bits31 = (bits >> jnp.uint32(1)).astype(jnp.int32)

    keep_thr = min(int(round(drop_p * 2.0 ** 31)), 2 ** 31 - 1)
    keep_scale = 1.0 / (1.0 - drop_p)

    kernel = functools.partial(
        _attn_dropout_kernel,
        n_valid=N, keep_thr=keep_thr, keep_scale=keep_scale)

    cost = pl.CostEstimate(
        flops=2 * B * (2 * Mp * Np * Dp),
        transcendentals=B * Mp * Np,
        bytes_accessed=(x1_p.size * 2 + x2_p.size * 2
                        + bits31.size * 4 + B * Mp * Dp * 4),
    )

    # NOTE: at production-sized M/N, add an M-tiling grid axis so the (M, N)
    # scores block stays bounded in VMEM (especially on v7x's 64 MiB).
    out_p = pl.pallas_call(
        kernel,
        out_shape=jax.ShapeDtypeStruct((B, Mp, Dp), jnp.float32),
        grid=(B,),
        in_specs=[
            pl.BlockSpec((1, Mp, Dp), lambda b: (b, 0, 0)),
            pl.BlockSpec((1, Np, Dp), lambda b: (b, 0, 0)),
            pl.BlockSpec((1, Mp, Np), lambda b: (b, 0, 0)),
        ],
        out_specs=pl.BlockSpec((1, Mp, Dp), lambda b: (b, 0, 0)),
        compiler_params=pltpu.CompilerParams(
            dimension_semantics=("parallel",),   # batches are independent
        ),
        cost_estimate=cost,
    )(x1_p, x2_p, bits31)

    out = out_p[:, :M, :D]
    if return_keep_mask:
        keep = bits31[:, :M, :N] >= jnp.int32(keep_thr)
        return out, keep
    return out


def _reference(x1, x2, keep, drop_p):
    s = jnp.einsum("bmd,bnd->bmn", x1, x2) * 0.125
    p = jax.nn.softmax(s, axis=-1)
    d = jnp.where(keep, p * (1.0 / (1.0 - drop_p)), 0.0)
    return jnp.einsum("bmn,bnd->bmd", d, x2)


if __name__ == "__main__":
    key = jax.random.PRNGKey(0)
    k1, k2, kd = jax.random.split(key, 3)

    # Same shapes the PyTorch module is exercised with.
    x1 = jax.random.normal(k1, (1, 75, 64), dtype=jnp.float32)
    x2 = jax.random.normal(k2, (1, 60, 64), dtype=jnp.float32)

    out, keep = attn_dropout(x1, x2, kd, drop_p=0.5, return_keep_mask=True)
    out = jax.block_until_ready(out)

    assert out.shape == (1, 75, 64), out.shape
    assert bool(jnp.all(jnp.isfinite(out)))

    # Cross-check against a pure-JAX f32 reference using the same dropout mask
    # (loose tolerance: kernel matmuls run in bf16 with f32 accumulation).
    ref = _reference(x1, x2, keep, 0.5)
    rel_err = jnp.linalg.norm(out - ref) / jnp.linalg.norm(ref)
    assert float(rel_err) < 6e-2, float(rel_err)

    print("KERNEL_OK")
</pallas_src>

<mosaic_0001>
module attributes {stable_mosaic.version = 11 : i64} {
  func.func @_attn_dropout_kernel(%arg0: i32, %arg1: memref<1x80x128xbf16, #tpu.memory_space<vmem>>, %arg2: memref<1x128x128xbf16, #tpu.memory_space<vmem>>, %arg3: memref<1x80x128xi32, #tpu.memory_space<vmem>>, %arg4: memref<1x80x128xf32, #tpu.memory_space<vmem>>) attributes {dimension_semantics = [#tpu.dimension_semantics<parallel>], iteration_bounds = array<i64: 1>, scalar_prefetch = 0 : i64, scratch_operands = 0 : i64, tpu.core_type = #tpu.core_type<tc>, window_params = [{transform_indices = @transform_0, window_bounds = array<i64: 1, 80, 128>}, {transform_indices = @transform_1, window_bounds = array<i64: 1, 128, 128>}, {transform_indices = @transform_2, window_bounds = array<i64: 1, 80, 128>}, {transform_indices = @transform_3, window_bounds = array<i64: 1, 80, 128>}]} {
    %c0 = arith.constant 0 : index
    %c0_0 = arith.constant 0 : index
    %c0_1 = arith.constant 0 : index
    %0 = vector.load %arg1[%c0, %c0_0, %c0_1] : memref<1x80x128xbf16, #tpu.memory_space<vmem>>, vector<1x80x128xbf16>
    %1 = vector.shape_cast %0 : vector<1x80x128xbf16> to vector<80x128xbf16>
    %c0_2 = arith.constant 0 : index
    %c0_3 = arith.constant 0 : index
    %c0_4 = arith.constant 0 : index
    %2 = vector.load %arg2[%c0_2, %c0_3, %c0_4] : memref<1x128x128xbf16, #tpu.memory_space<vmem>>, vector<1x128x128xbf16>
    %3 = vector.shape_cast %2 : vector<1x128x128xbf16> to vector<128x128xbf16>
    %cst = arith.constant dense<0.000000e+00> : vector<80x128xf32>
    %4 = tpu.matmul %1, %3, %cst {dimension_numbers = #tpu.dot_dimension_numbers<[1], [1], [0], [0], [0, 0, 1, 0], [], []>} : vector<80x128xbf16>, vector<128x128xbf16>, vector<80x128xf32> -> vector<80x128xf32>
    %cst_5 = arith.constant 1.250000e-01 : f32
    %5 = vector.broadcast %cst_5 : f32 to vector<80x128xf32>
    %6 = arith.mulf %4, %5 : vector<80x128xf32>
    %7 = tpu.iota {dimensions = array<i32: 1>} : vector<80x128xi32>
    %c60_i32 = arith.constant 60 : i32
    %8 = vector.broadcast %c60_i32 : i32 to vector<80x128xi32>
    %9 = arith.cmpi slt, %7, %8 : vector<80x128xi32>
    %cst_6 = arith.constant 0xFF800000 : f32
    %10 = vector.broadcast %cst_6 : f32 to vector<80x128xf32>
    %11 = arith.select %9, %6, %10 : vector<80x128xi1>, vector<80x128xf32>
    %cst_7 = arith.constant dense<0xFF800000> : vector<80xf32>
    %12 = vector.multi_reduction <maximumf>, %11, %cst_7 [1] : vector<80x128xf32> to vector<80xf32>
    %13 = vector.shape_cast %12 : vector<80xf32> to vector<80x1xf32>
    %14 = vector.broadcast %13 : vector<80x1xf32> to vector<80x128xf32>
    %15 = arith.subf %11, %14 : vector<80x128xf32>
    %16 = math.exp %15 : vector<80x128xf32>
    %cst_8 = arith.constant dense<0.000000e+00> : vector<80xf32>
    %17 = vector.multi_reduction <add>, %16, %cst_8 [1] : vector<80x128xf32> to vector<80xf32>
    %18 = vector.shape_cast %17 : vector<80xf32> to vector<80x1xf32>
    %c0_9 = arith.constant 0 : index
    %c0_10 = arith.constant 0 : index
    %c0_11 = arith.constant 0 : index
    %19 = vector.load %arg3[%c0_9, %c0_10, %c0_11] : memref<1x80x128xi32, #tpu.memory_space<vmem>>, vector<1x80x128xi32>
    %20 = vector.shape_cast %19 : vector<1x80x128xi32> to vector<80x128xi32>
    %c1073741824_i32 = arith.constant 1073741824 : i32
    %21 = vector.broadcast %c1073741824_i32 : i32 to vector<80x128xi32>
    %22 = arith.cmpi sge, %20, %21 : vector<80x128xi32>
    %cst_12 = arith.constant 0.000000e+00 : f32
    %23 = vector.broadcast %cst_12 : f32 to vector<80x128xf32>
    %24 = arith.select %22, %16, %23 : vector<80x128xi1>, vector<80x128xf32>
    %25 = arith.truncf %24 : vector<80x128xf32> to vector<80x128xbf16>
    %cst_13 = arith.constant dense<0.000000e+00> : vector<80x128xf32>
    %26 = tpu.matmul %25, %3, %cst_13 {dimension_numbers = #tpu.dot_dimension_numbers<[1], [0], [0], [1], [0, 0, 1, 1], [], []>} : vector<80x128xbf16>, vector<128x128xbf16>, vector<80x128xf32> -> vector<80x128xf32>
    %27 = tpu.reciprocal %18 {approx = true} : vector<80x1xf32> -> vector<80x1xf32>
    %cst_14 = arith.constant 2.000000e+00 : f32
    %28 = vector.broadcast %cst_14 : f32 to vector<80x1xf32>
    %29 = arith.mulf %27, %28 : vector<80x1xf32>
    %30 = vector.broadcast %29 : vector<80x1xf32> to vector<80x128xf32>
    %31 = arith.mulf %26, %30 : vector<80x128xf32>
    %c0_15 = arith.constant 0 : index
    %c0_16 = arith.constant 0 : index
    %c0_17 = arith.constant 0 : index
    %32 = vector.load %arg4[%c0_15, %c0_16, %c0_17] : memref<1x80x128xf32, #tpu.memory_space<vmem>>, vector<1x80x128xf32>
    %33 = vector.shape_cast %32 : vector<1x80x128xf32> to vector<80x128xf32>
    %34 = vector.shape_cast %31 : vector<80x128xf32> to vector<1x80x128xf32>
    tpu.vector_store %arg4[%c0_15, %c0_16, %c0_17], %34 {strides = array<i32>} : memref<1x80x128xf32, #tpu.memory_space<vmem>>, vector<1x80x128xf32>,
    return
  }
  func.func @transform_0(%arg0: i32) -> (i32, i32, i32) {
    %c0_i32 = arith.constant 0 : i32
    %c0_i32_0 = arith.constant 0 : i32
    %c0_i32_1 = arith.constant 0 : i32
    return %arg0, %c0_i32, %c0_i32_0 : i32, i32, i32
  }
  func.func @transform_1(%arg0: i32) -> (i32, i32, i32) {
    %c0_i32 = arith.constant 0 : i32
    %c0_i32_0 = arith.constant 0 : i32
    %c0_i32_1 = arith.constant 0 : i32
    return %arg0, %c0_i32, %c0_i32_0 : i32, i32, i32
  }
  func.func @transform_2(%arg0: i32) -> (i32, i32, i32) {
    %c0_i32 = arith.constant 0 : i32
    %c0_i32_0 = arith.constant 0 : i32
    %c0_i32_1 = arith.constant 0 : i32
    return %arg0, %c0_i32, %c0_i32_0 : i32, i32, i32
  }
  func.func @transform_3(%arg0: i32) -> (i32, i32, i32) {
    %c0_i32 = arith.constant 0 : i32
    %c0_i32_0 = arith.constant 0 : i32
    %c0_i32_1 = arith.constant 0 : i32
    return %arg0, %c0_i32, %c0_i32_0 : i32, i32, i32
  }
}

</mosaic_0001>

<llo_original>
// kernel: tpu_custom_call.1
$region0: #{tpu_custom_call.1}
  #allocation0 [shape = 'u32[]', space=smem, size = 0x4, offset = 0x4, fixed_abs, tag = 'smem constant byte address 0x4 - core index']
  #allocation1 [shape = 'u32[72,128]{1,0:T(1,128)}', space=vmem, size = 0x9000, scoped, tag = 'internal scratch']
  %s0 = inlined_call_operand.hbm [shape: bf16[1,80,128], index: 0, kind: input, shape index: {}]
  %s1 = inlined_call_operand.hbm [shape: bf16[1,128,128], index: 1, kind: input, shape index: {}]
  %s2 = inlined_call_operand.hbm [shape: s32[1,80,128], index: 2, kind: input, shape index: {}]
  %s3 = inlined_call_operand.hbm [shape: f32[1,80,128], index: 3, kind: output, shape index: {}]
  %s4 = sld [smem:[#allocation0]]
  $region34: #{tpu_custom_call.1} parent=0
    _
  %s6 = ssub.s32 1, %s4
  %s7 = scalar_select 0, %s6, %s4
  $region1: #{tpu_custom_call.1} parent=0
    #allocation2 [shape = 'u8[20480]{0}', space=vmem, size = 0x5000, scoped, tag = 'input window, operand 0, single buffered']
    #allocation3 [shape = 's32[1]{0}', space=sflag, size = 0x4, scoped, tag = 'scoped memory for tpu_custom_call.1']
    #allocation4 [shape = 's32[1]{0}', space=sflag, size = 0x4, scoped, tag = 'scoped memory for tpu_custom_call.1']
    #allocation5 [shape = 'u8[32768]{0}', space=vmem, size = 0x8000, scoped, tag = 'input window, operand 1, single buffered']
    #allocation6 [shape = 's32[1]{0}', space=sflag, size = 0x4, scoped, tag = 'scoped memory for tpu_custom_call.1']
    #allocation7 [shape = 'u8[40960]{0}', space=vmem, size = 0xa000, scoped, tag = 'input window, operand 2, single buffered']
    #allocation8 [shape = 'u8[40960]{0}', space=vmem, size = 0xa000, scoped, tag = 'output window, operand 0, single buffered']
    %8 = vsyncpa [#allocation3], 0
    %9 = vsyncpa [#allocation6], 0
    %10 = vsyncpa [#allocation4], 0
    // Predicated region
    $region2: #{tpu_custom_call.1} parent=1 // pred_check
      _
    $region3: #{tpu_custom_call.1} parent=1 // pred_check_branch
      %12 = sbr.rel (0) target = $region5
    $region4: #{tpu_custom_call.1} parent=1 // pred_region
      %14 = vsyncadd [#allocation3], 0
      %s15 = sshll.u32 %s0, 4
      %s16 = int_to_ptr.hbm [resolvable:$true] %s15
      %s17 = sshll.u32 [#allocation2], 4
      %s18 = int_to_ptr.vmem [resolvable:$true] %s17
      %23 = dma.hbm_to_vmem [thread:$0]  %s16, 640, %s18, [#allocation3], 64, 64, 4
    $region5: #{tpu_custom_call.1} parent=1 // pred_fallthru
      _
    // Predicated region
    $region6: #{tpu_custom_call.1} parent=1 // pred_check
      _
    $region7: #{tpu_custom_call.1} parent=1 // pred_check_branch
      %25 = sbr.rel (0) target = $region9
    $region8: #{tpu_custom_call.1} parent=1 // pred_region
      %27 = vsyncadd [#allocation6], 0
      %s28 = sshll.u32 %s1, 4
      %s29 = int_to_ptr.hbm [resolvable:$true] %s28
      %s30 = sshll.u32 [#allocation5], 4
      %s31 = int_to_ptr.vmem [resolvable:$true] %s30
      %36 = dma.hbm_to_vmem [thread:$0]  %s29, 1024, %s31, [#allocation6], 64, 64, 4
    $region9: #{tpu_custom_call.1} parent=1 // pred_fallthru
      _
    // Predicated region
    $region10: #{tpu_custom_call.1} parent=1 // pred_check
      _
    $region11: #{tpu_custom_call.1} parent=1 // pred_check_branch
      %38 = sbr.rel (0) target = $region13
    $region12: #{tpu_custom_call.1} parent=1 // pred_region
      %40 = vsyncadd [#allocation6], 0
      %s41 = sshll.u32 %s2, 4
      %s42 = int_to_ptr.hbm [resolvable:$true] %s41
      %s43 = sshll.u32 [#allocation7], 4
      %s44 = int_to_ptr.vmem [resolvable:$true] %s43
      %49 = dma.hbm_to_vmem [thread:$0]  %s42, 1280, %s44, [#allocation6], 128, 128, 8
    $region13: #{tpu_custom_call.1} parent=1 // pred_fallthru
      _
    // Predicated region
    $region14: #{tpu_custom_call.1} parent=1 // pred_check
      _
    $region15: #{tpu_custom_call.1} parent=1 // pred_check_branch
      %51 = sbr.rel (0) target = $region17
    $region16: #{tpu_custom_call.1} parent=1 // pred_region
      %53 = dma.done [#allocation3], 640
    $region17: #{tpu_custom_call.1} parent=1 // pred_fallthru
      _
    // Predicated region
    $region18: #{tpu_custom_call.1} parent=1 // pred_check
      _
    $region19: #{tpu_custom_call.1} parent=1 // pred_check_branch
      %55 = sbr.rel (0) target = $region21
    $region20: #{tpu_custom_call.1} parent=1 // pred_region
      %57 = dma.done [#allocation6], 1024
    $region21: #{tpu_custom_call.1} parent=1 // pred_fallthru
      _
    // Predicated region
    $region22: #{tpu_custom_call.1} parent=1 // pred_check
      _
    $region23: #{tpu_custom_call.1} parent=1 // pred_check_branch
      %59 = sbr.rel (0) target = $region25
    $region24: #{tpu_custom_call.1} parent=1 // pred_region
      %61 = dma.done [#allocation6], 1280
    $region25: #{tpu_custom_call.1} parent=1 // pred_fallthru
      _
    %v62 = vld [vmem:[#allocation2] sm:$0xf]
    %v63 = vld [vmem:[#allocation2 + $0x4] sm:$0xf]
    %v64 = vld [vmem:[#allocation2 + $0x8] sm:$0xf]
    %v65 = vld [vmem:[#allocation2 + $0xc] sm:$0xf]
    %v66 = vld [vmem:[#allocation2 + $0x10] sm:$0xf]
    %v67 = vld [vmem:[#allocation2 + $0x14] sm:$0xf]
    %v68 = vld [vmem:[#allocation2 + $0x18] sm:$0xf]
    %v69 = vld [vmem:[#allocation2 + $0x1c] sm:$0xf]
    %v70 = vld [vmem:[#allocation2 + $0x20] sm:$0xf]
    %v71 = vld [vmem:[#allocation2 + $0x24] sm:$0xf]
    %v72 = vld [vmem:[#allocation5] sm:$0xf]
    %v73 = vld [vmem:[#allocation5 + $0x4] sm:$0xf]
    %v74 = vld [vmem:[#allocation5 + $0x8] sm:$0xf]
    %v75 = vld [vmem:[#allocation5 + $0xc] sm:$0xf]
    %v76 = vld [vmem:[#allocation5 + $0x10] sm:$0xf]
    %v77 = vld [vmem:[#allocation5 + $0x14] sm:$0xf]
    %v78 = vld [vmem:[#allocation5 + $0x18] sm:$0xf]
    %v79 = vld [vmem:[#allocation5 + $0x1c] sm:$0xf]
    %v80 = vld [vmem:[#allocation5 + $0x20] sm:$0xf]
    %v81 = vld [vmem:[#allocation5 + $0x24] sm:$0xf]
    %v82 = vld [vmem:[#allocation5 + $0x28] sm:$0xf]
    %v83 = vld [vmem:[#allocation5 + $0x2c] sm:$0xf]
    %v84 = vld [vmem:[#allocation5 + $0x30] sm:$0xf]
    %v85 = vld [vmem:[#allocation5 + $0x34] sm:$0xf]
    %v86 = vld [vmem:[#allocation5 + $0x38] sm:$0xf]
    %v87 = vld [vmem:[#allocation5 + $0x3c] sm:$0xf]
    %v98 = vunpack.c.l.b16 %v62
    %v99 = vunpack.c.l.b16 %v63
    %v100 = vunpack.c.l.b16 %v64
    %v101 = vunpack.c.l.b16 %v65
    %v102 = vunpack.c.l.b16 %v66
    %v103 = vunpack.c.l.b16 %v67
    %v104 = vunpack.c.l.b16 %v68
    %v105 = vunpack.c.l.b16 %v69
    %v106 = vunpack.c.l.b16 %v70
    %v107 = vunpack.c.l.b16 %v71
    %v108 = vpack.c.b16 %v99, %v98
    %v109 = vpack.c.b16 %v101, %v100
    %v110 = vpack.c.b16 %v103, %v102
    %v111 = vpack.c.b16 %v105, %v104
    %v112 = vpack.c.b16 %v107, %v106
    %v134 = vunpack.c.l.b16 %v72
    %v135 = vunpack.c.l.b16 %v73
    %v136 = vunpack.c.l.b16 %v74
    %v137 = vunpack.c.l.b16 %v75
    %v138 = vunpack.c.l.b16 %v76
    %v139 = vunpack.c.l.b16 %v77
    %v140 = vunpack.c.l.b16 %v78
    %v141 = vunpack.c.l.b16 %v79
    %v142 = vunpack.c.l.b16 %v80
    %v143 = vunpack.c.l.b16 %v81
    %v144 = vunpack.c.l.b16 %v82
    %v145 = vunpack.c.l.b16 %v83
    %v146 = vunpack.c.l.b16 %v84
    %v147 = vunpack.c.l.b16 %v85
    %v148 = vunpack.c.l.b16 %v86
    %v149 = vunpack.c.l.b16 %v87
    %v150 = vpack.c.b16 %v135, %v134
    %v151 = vpack.c.b16 %v137, %v136
    %v152 = vpack.c.b16 %v139, %v138
    %v153 = vpack.c.b16 %v141, %v140
    %v154 = vpack.c.b16 %v143, %v142
    %v155 = vpack.c.b16 %v145, %v144
    %v156 = vpack.c.b16 %v147, %v146
    %v157 = vpack.c.b16 %v149, %v148
    %166 = vmatpush.bf16.xpose.msra.mxu0 %v157
    %167 = vmatpush.bf16.xpose.msra.mxu0 %v156
    %168 = vmatpush.bf16.xpose.msra.mxu0 %v155
    %169 = vmatpush.bf16.xpose.msra.mxu0 %v154
    %170 = vmatpush.bf16.xpose.msra.mxu0 %v153
    %171 = vmatpush.bf16.xpose.msra.mxu0 %v152
    %172 = vmatpush.bf16.xpose.msra.mxu0 %v151
    %173 = vmatpush.bf16.xpose.msra.mxu0 %v150
    %174 = vmatmul.bf16.gmra.mxu0 %v108
    %v175 = vpop.f32.mrf.mxu0
    %v176 = vadd.f32 0.0, %v175
    %v177 = vpop.f32.mrf.mxu0
    %v178 = vadd.f32 0.0, %v177
    %179 = vmatmul.bf16.gmra.mxu0 %v109
    %v180 = vpop.f32.mrf.mxu0
    %v181 = vadd.f32 0.0, %v180
    %v182 = vpop.f32.mrf.mxu0
    %v183 = vadd.f32 0.0, %v182
    %184 = vmatmul.bf16.gmra.mxu0 %v110
    %v185 = vpop.f32.mrf.mxu0
    %v186 = vadd.f32 0.0, %v185
    %v187 = vpop.f32.mrf.mxu0
    %v188 = vadd.f32 0.0, %v187
    %189 = vmatmul.bf16.gmra.mxu0 %v111
    %v190 = vpop.f32.mrf.mxu0
    %v191 = vadd.f32 0.0, %v190
    %v192 = vpop.f32.mrf.mxu0
    %v193 = vadd.f32 0.0, %v192
    %194 = vmatmul.bf16.gmra.mxu0 %v112
    %v195 = vpop.f32.mrf.mxu0
    %v196 = vadd.f32 0.0, %v195
    %v197 = vpop.f32.mrf.mxu0
    %v198 = vadd.f32 0.0, %v197
    %199 = vdwg.mxu0
    %v200 = vmul.f32 %v176, 0.125
    %v201 = vmul.f32 %v178, 0.125
    %v202 = vmul.f32 %v181, 0.125
    %v203 = vmul.f32 %v183, 0.125
    %v204 = vmul.f32 %v186, 0.125
    %v205 = vmul.f32 %v188, 0.125
    %v206 = vmul.f32 %v191, 0.125
    %v207 = vmul.f32 %v193, 0.125
    %v208 = vmul.f32 %v196, 0.125
    %v209 = vmul.f32 %v198, 0.125
    %v210 = vlaneseq
    %v211 = vand.u32 %v210, 127
    %vm212 = vcmp.lt.s32.totalorder %v211, 60
    %v213 = vsel %vm212, %v200, -inf
    %v214 = vsel %vm212, %v201, -inf
    %v215 = vsel %vm212, %v202, -inf
    %v216 = vsel %vm212, %v203, -inf
    %v217 = vsel %vm212, %v204, -inf
    %v218 = vsel %vm212, %v205, -inf
    %v219 = vsel %vm212, %v206, -inf
    %v220 = vsel %vm212, %v207, -inf
    %v221 = vsel %vm212, %v208, -inf
    %v222 = vsel %vm212, %v209, -inf
    %223 = vmax.xlane.f32.xlu0 %v213
    %v224 = vpop.xlane.xlu0 %223
    %225 = vmax.xlane.f32.xlu0 %v214
    %v226 = vpop.xlane.xlu0 %225
    %227 = vmax.xlane.f32.xlu0 %v215
    %v228 = vpop.xlane.xlu0 %227
    %229 = vmax.xlane.f32.xlu0 %v216
    %v230 = vpop.xlane.xlu0 %229
    %231 = vmax.xlane.f32.xlu0 %v217
    %v232 = vpop.xlane.xlu0 %231
    %233 = vmax.xlane.f32.xlu0 %v218
    %v234 = vpop.xlane.xlu0 %233
    %235 = vmax.xlane.f32.xlu0 %v219
    %v236 = vpop.xlane.xlu0 %235
    %237 = vmax.xlane.f32.xlu0 %v220
    %v238 = vpop.xlane.xlu0 %237
    %239 = vmax.xlane.f32.xlu0 %v221
    %v240 = vpop.xlane.xlu0 %239
    %241 = vmax.xlane.f32.xlu0 %v222
    %v242 = vpop.xlane.xlu0 %241
    %v243 = vsub.f32 %v213, %v224
    %v244 = vsub.f32 %v214, %v226
    %v245 = vsub.f32 %v215, %v228
    %v246 = vsub.f32 %v216, %v230
    %v247 = vsub.f32 %v217, %v232
    %v248 = vsub.f32 %v218, %v234
    %v249 = vsub.f32 %v219, %v236
    %v250 = vsub.f32 %v220, %v238
    %v251 = vsub.f32 %v221, %v240
    %v252 = vsub.f32 %v222, %v242
    %v253 = vmul.f32 %v243, 1.442695
    %v254 = vpow.pop %v253
    %v255 = vmul.f32 %v244, 1.442695
    %v256 = vpow.pop %v255
    %v257 = vmul.f32 %v245, 1.442695
    %v258 = vpow.pop %v257
    %v259 = vmul.f32 %v246, 1.442695
    %v260 = vpow.pop %v259
    %v261 = vmul.f32 %v247, 1.442695
    %v262 = vpow.pop %v261
    %v263 = vmul.f32 %v248, 1.442695
    %v264 = vpow.pop %v263
    %v265 = vmul.f32 %v249, 1.442695
    %v266 = vpow.pop %v265
    %v267 = vmul.f32 %v250, 1.442695
    %v268 = vpow.pop %v267
    %v269 = vmul.f32 %v251, 1.442695
    %v270 = vpow.pop %v269
    %v271 = vmul.f32 %v252, 1.442695
    %v272 = vpow.pop %v271
    %273 = vadd.xlane.f32.xlu0 %v254
    %v274 = vpop.xlane.xlu0 %273
    %275 = vadd.xlane.f32.xlu0 %v256
    %v276 = vpop.xlane.xlu0 %275
    %277 = vadd.xlane.f32.xlu0 %v258
    %v278 = vpop.xlane.xlu0 %277
    %279 = vadd.xlane.f32.xlu0 %v260
    %v280 = vpop.xlane.xlu0 %279
    %281 = vadd.xlane.f32.xlu0 %v262
    %v282 = vpop.xlane.xlu0 %281
    %283 = vadd.xlane.f32.xlu0 %v264
    %v284 = vpop.xlane.xlu0 %283
    %285 = vadd.xlane.f32.xlu0 %v266
    %v286 = vpop.xlane.xlu0 %285
    %287 = vadd.xlane.f32.xlu0 %v268
    %v288 = vpop.xlane.xlu0 %287
    %289 = vadd.xlane.f32.xlu0 %v270
    %v290 = vpop.xlane.xlu0 %289
    %291 = vadd.xlane.f32.xlu0 %v272
    %v292 = vpop.xlane.xlu0 %291
    %v293 = vld [vmem:[#allocation7] sm:$0xff]
    %v294 = vld [vmem:[#allocation7 + $0x8] sm:$0xff]
    %v295 = vld [vmem:[#allocation7 + $0x10] sm:$0xff]
    %v296 = vld [vmem:[#allocation7 + $0x18] sm:$0xff]
    %v297 = vld [vmem:[#allocation7 + $0x20] sm:$0xff]
    %v298 = vld [vmem:[#allocation7 + $0x28] sm:$0xff]
    %v299 = vld [vmem:[#allocation7 + $0x30] sm:$0xff]
    %v300 = vld [vmem:[#allocation7 + $0x38] sm:$0xff]
    %v301 = vld [vmem:[#allocation7 + $0x40] sm:$0xff]
    %v302 = vld [vmem:[#allocation7 + $0x48] sm:$0xff]
    %vm303 = vcmp.ge.s32.totalorder %v293, 1073741824
    %vm304 = vcmp.ge.s32.totalorder %v294, 1073741824
    %vm305 = vcmp.ge.s32.totalorder %v295, 1073741824
    %vm306 = vcmp.ge.s32.totalorder %v296, 1073741824
    %vm307 = vcmp.ge.s32.totalorder %v297, 1073741824
    %vm308 = vcmp.ge.s32.totalorder %v298, 1073741824
    %vm309 = vcmp.ge.s32.totalorder %v299, 1073741824
    %vm310 = vcmp.ge.s32.totalorder %v300, 1073741824
    %vm311 = vcmp.ge.s32.totalorder %v301, 1073741824
    %vm312 = vcmp.ge.s32.totalorder %v302, 1073741824
    %v313 = vsel %vm303, %v254, 0.0
    %v314 = vsel %vm304, %v256, 0.0
    %v315 = vsel %vm305, %v258, 0.0
    %v316 = vsel %vm306, %v260, 0.0
    %v317 = vsel %vm307, %v262, 0.0
    %v318 = vsel %vm308, %v264, 0.0
    %v319 = vsel %vm309, %v266, 0.0
    %v320 = vsel %vm310, %v268, 0.0
    %v321 = vsel %vm311, %v270, 0.0
    %v322 = vsel %vm312, %v272, 0.0
    %v323 = vpack.c.bf16 %v314, %v313
    %v324 = vpack.c.bf16 %v316, %v315
    %v325 = vpack.c.bf16 %v318, %v317
    %v326 = vpack.c.bf16 %v320, %v319
    %v327 = vpack.c.bf16 %v322, %v321
    %328 = vmatpush.bf16.msra.mxu0 %v157
    %329 = vmatpush.bf16.msra.mxu0 %v156
    %330 = vmatpush.bf16.msra.mxu0 %v155
    %331 = vmatpush.bf16.msra.mxu0 %v154
    %332 = vmatpush.bf16.msra.mxu0 %v153
    %333 = vmatpush.bf16.msra.mxu0 %v152
    %334 = vmatpush.bf16.msra.mxu0 %v151
    %335 = vmatpush.bf16.msra.mxu0 %v150
    %336 = vmatmul.bf16.gmra.mxu0 %v323
    %v337 = vpop.f32.mrf.mxu0
    %v338 = vadd.f32 0.0, %v337
    %v339 = vpop.f32.mrf.mxu0
    %v340 = vadd.f32 0.0, %v339
    %341 = vmatmul.bf16.gmra.mxu0 %v324
    %v342 = vpop.f32.mrf.mxu0
    %v343 = vadd.f32 0.0, %v342
    %v344 = vpop.f32.mrf.mxu0
    %v345 = vadd.f32 0.0, %v344
    %346 = vmatmul.bf16.gmra.mxu0 %v325
    %v347 = vpop.f32.mrf.mxu0
    %v348 = vadd.f32 0.0, %v347
    %v349 = vpop.f32.mrf.mxu0
    %v350 = vadd.f32 0.0, %v349
    %351 = vmatmul.bf16.gmra.mxu0 %v326
    %v352 = vpop.f32.mrf.mxu0
    %v353 = vadd.f32 0.0, %v352
    %v354 = vpop.f32.mrf.mxu0
    %v355 = vadd.f32 0.0, %v354
    %356 = vmatmul.bf16.gmra.mxu0 %v327
    %v357 = vpop.f32.mrf.mxu0
    %v358 = vadd.f32 0.0, %v357
    %v359 = vpop.f32.mrf.mxu0
    %v360 = vadd.f32 0.0, %v359
    %361 = vdwg.mxu0
    %v362 = vrcp.pop %v274
    %v363 = vrcp.pop %v276
    %v364 = vrcp.pop %v278
    %v365 = vrcp.pop %v280
    %v366 = vrcp.pop %v282
    %v367 = vrcp.pop %v284
    %v368 = vrcp.pop %v286
    %v369 = vrcp.pop %v288
    %v370 = vrcp.pop %v290
    %v371 = vrcp.pop %v292
    %v372 = vmul.f32 %v362, 2.0
    %v373 = vmul.f32 %v363, 2.0
    %v374 = vmul.f32 %v364, 2.0
    %v375 = vmul.f32 %v365, 2.0
    %v376 = vmul.f32 %v366, 2.0
    %v377 = vmul.f32 %v367, 2.0
    %v378 = vmul.f32 %v368, 2.0
    %v379 = vmul.f32 %v369, 2.0
    %v380 = vmul.f32 %v370, 2.0
    %v381 = vmul.f32 %v371, 2.0
    %v382 = vmul.f32 %v338, %v372
    %v383 = vmul.f32 %v340, %v373
    %v384 = vmul.f32 %v343, %v374
    %v385 = vmul.f32 %v345, %v375
    %v386 = vmul.f32 %v348, %v376
    %v387 = vmul.f32 %v350, %v377
    %v388 = vmul.f32 %v353, %v378
    %v389 = vmul.f32 %v355, %v379
    %v390 = vmul.f32 %v358, %v380
    %v391 = vmul.f32 %v360, %v381
    %392 = vst [vmem:[#allocation8] sm:$0xff] %v382
    %393 = vst [vmem:[#allocation8 + $0x8] sm:$0xff] %v383
    %394 = vst [vmem:[#allocation8 + $0x10] sm:$0xff] %v384
    %395 = vst [vmem:[#allocation8 + $0x18] sm:$0xff] %v385
    %396 = vst [vmem:[#allocation8 + $0x20] sm:$0xff] %v386
    %397 = vst [vmem:[#allocation8 + $0x28] sm:$0xff] %v387
    %398 = vst [vmem:[#allocation8 + $0x30] sm:$0xff] %v388
    %399 = vst [vmem:[#allocation8 + $0x38] sm:$0xff] %v389
    %400 = vst [vmem:[#allocation8 + $0x40] sm:$0xff] %v390
    %401 = vst [vmem:[#allocation8 + $0x48] sm:$0xff] %v391
    // Predicated region
    $region26: #{tpu_custom_call.1} parent=1 // pred_check
      _
    $region27: #{tpu_custom_call.1} parent=1 // pred_check_branch
      %403 = sbr.rel (0) target = $region29
    $region28: #{tpu_custom_call.1} parent=1 // pred_region
      %405 = vsyncadd [#allocation4], 0
      %s406 = sshll.u32 [#allocation8], 4
      %s407 = int_to_ptr.vmem [resolvable:$true] %s406
      %s408 = sshll.u32 %s3, 4
      %s409 = int_to_ptr.hbm [resolvable:$true] %s408
      %414 = dma.vmem_to_hbm [thread:$0]  %s407, 1280, %s409, [#allocation4], 128, 128, 8
    $region29: #{tpu_custom_call.1} parent=1 // pred_fallthru
      _
    // Predicated region
    $region30: #{tpu_custom_call.1} parent=1 // pred_check
      _
    $region31: #{tpu_custom_call.1} parent=1 // pred_check_branch
      %416 = sbr.rel (0) target = $region33
    $region32: #{tpu_custom_call.1} parent=1 // pred_region
      %418 = dma.done [#allocation4], 1280
    $region33: #{tpu_custom_call.1} parent=1 // pred_fallthru
      _
    %419 = vsyncpa [#allocation3], 1
    %420 = vsyncpa [#allocation6], 1
    %421 = vsyncpa [#allocation4], 1

</llo_original>
